<compile_context>
chip_gen: v5e
topology: v5e:2x2
jax: 0.10.0
libtpu: 0.0.40
codegen_flags: <defaults>
</compile_context>

<pallas_src>
import functools

import jax
import jax.numpy as jnp
from jax.experimental import pallas as pl
from jax.experimental.pallas import tpu as pltpu


# ---------------------------------------------------------------------------
# Model hyper-parameters (small, consistent with the module's __init__ args).
# ---------------------------------------------------------------------------
BATCH = 2          # B
NUM_NODES = 8      # N (graph size)
INPUT_SIZE = 4     # F
HIDDEN_SIZE = 32   # H
LATENT_SIZE = 16   # L
MLP_ARCH = [HIDDEN_SIZE]   # one hidden layer in the node-encoder MLP
GNN_ITER = 2
GNN_ASYNC = False          # ignored (synchronous updates only)

_SUB = 8  # f32 sublane granularity


def _round_up(n, m):
    return (n + m - 1) // m * m


# ---------------------------------------------------------------------------
# Parameter slab layout: every section starts on an 8-row (sublane) boundary.
# ---------------------------------------------------------------------------
def _slab_layout(f_pad, hidden):
    offs, r = {}, 0
    for name, rows in (("we0", f_pad), ("be0", _SUB),
                       ("we1", hidden), ("be1", _SUB),
                       ("ws", hidden), ("wn", hidden), ("bg", _SUB),
                       ("wo", hidden), ("bo", _SUB)):
        offs[name] = r
        r += rows
    return offs, r


def _pack_params(p, f_pad, hidden, latent):
    assert hidden % _SUB == 0 and latent <= hidden
    pad_rows = lambda a, n: jnp.pad(a, ((0, n - a.shape[0]), (0, 0)))
    pad_cols = lambda a, n: jnp.pad(a, ((0, 0), (0, n - a.shape[1])))
    pieces = [
        pad_rows(p["we0"], f_pad),                    # zero rows eat padded x cols
        pad_rows(p["be0"], _SUB),
        pad_rows(p["we1"], hidden),
        pad_rows(p["be1"], _SUB),
        p["ws"],                                      # (H, H)
        p["wn"],                                      # (H, H)
        pad_rows(p["bg"], _SUB),
        pad_rows(pad_cols(p["wo"], hidden), hidden),  # (H, H), cols >= L zero
        pad_rows(pad_cols(p["bo"], hidden), _SUB),    # (8, H), cols >= L zero
    ]
    return jnp.concatenate(pieces, axis=0).astype(jnp.float32)


# ---------------------------------------------------------------------------
# Pallas kernel: full forward pass for the whole batch in one invocation.
# ---------------------------------------------------------------------------
def _encoder_kernel(x_ref, adj_ref, w_ref, out_ref, *,
                    offs, batch, n_nodes, f_pad, hidden, gnn_iter):
    bn = batch * n_nodes

    # --- unpack the packed parameter slab once (static, sublane-aligned) ---
    we0 = w_ref[pl.ds(offs["we0"], f_pad), :]        # (f_pad, H)
    be0 = w_ref[pl.ds(offs["be0"], 1), :]            # (1, H)
    we1 = w_ref[pl.ds(offs["we1"], hidden), :]       # (H, H)
    be1 = w_ref[pl.ds(offs["be1"], 1), :]            # (1, H)
    ws = w_ref[pl.ds(offs["ws"], hidden), :]         # (H, H)
    wn = w_ref[pl.ds(offs["wn"], hidden), :]         # (H, H)
    bg = w_ref[pl.ds(offs["bg"], 1), :]              # (1, H)
    wo = w_ref[pl.ds(offs["wo"], hidden), :]         # (H, H), cols >= L zero
    bo = w_ref[pl.ds(offs["bo"], 1), :]              # (1, H), cols >= L zero

    x = x_ref[...]                                   # (B*N, f_pad)
    adj_bd = adj_ref[...]                            # (B*N, B*N) block-diagonal

    # --- node encoder MLP over all B*N nodes at once ---
    h = jnp.maximum(
        jnp.dot(x, we0, preferred_element_type=jnp.float32) + be0, 0.0)
    h = jnp.maximum(
        jnp.dot(h, we1, preferred_element_type=jnp.float32) + be1, 0.0)

    # --- synchronous message passing (weights shared across iterations) ---
    bg_b = jnp.broadcast_to(bg, (bn, hidden))        # hoisted out of the loop
    for _ in range(gnn_iter):
        m = jnp.dot(adj_bd, h, preferred_element_type=jnp.float32)   # (B*N, H)
        h = jnp.maximum(
            jnp.dot(h, ws, preferred_element_type=jnp.float32)
            + jnp.dot(m, wn, preferred_element_type=jnp.float32)
            + bg_b, 0.0)

    # --- AdaptiveAvgPool1d(1): mean over each graph's nodes as ONE matmul ---
    rows = jax.lax.broadcasted_iota(jnp.int32, (batch, bn), 0)
    cols = jax.lax.broadcasted_iota(jnp.int32, (batch, bn), 1)
    in_graph = (cols >= rows * n_nodes) & (cols < (rows + 1) * n_nodes)
    pool_mat = jnp.where(in_graph, 1.0 / n_nodes, 0.0).astype(jnp.float32)
    pooled = jnp.dot(pool_mat, h, preferred_element_type=jnp.float32)  # (B, H)

    # --- latent readout for the whole batch in one matmul ---
    out_ref[...] = (jnp.dot(pooled, wo, preferred_element_type=jnp.float32)
                    + bo)                            # (B, H); padded cols are 0


def pooling_graph_encoder(x, adj, params, *, gnn_iter=GNN_ITER):
    """x: (B, N, F) float32, adj: (B, N, N) float32 -> (B, L) float32."""
    B, N, F = x.shape
    H = params["we0"].shape[1]
    L = params["wo"].shape[1]
    Fp = _round_up(F, _SUB)

    offs, slab_rows = _slab_layout(Fp, H)
    slab = _pack_params(params, Fp, H, L)                        # (slab_rows, H)
    x_flat = jnp.pad(x, ((0, 0), (0, 0), (0, Fp - F))).reshape(B * N, Fp)
    # block-diagonal adjacency: one matmul per GNN iteration for the whole batch
    adj_bd = jnp.einsum("bc,bij->bicj", jnp.eye(B, dtype=adj.dtype),
                        adj).reshape(B * N, B * N)

    kernel = functools.partial(
        _encoder_kernel, offs=offs, batch=B, n_nodes=N,
        f_pad=Fp, hidden=H, gnn_iter=gnn_iter)

    out = pl.pallas_call(
        kernel,
        out_shape=jax.ShapeDtypeStruct((B, H), jnp.float32),
        grid=(1,),                                               # single step
        in_specs=[
            pl.BlockSpec((B * N, Fp), lambda i: (0, 0)),         # stacked nodes
            pl.BlockSpec((B * N, B * N), lambda i: (0, 0)),      # block-diag adj
            pl.BlockSpec((slab_rows, H), lambda i: (0, 0)),      # packed params
        ],
        out_specs=pl.BlockSpec((B, H), lambda i: (0, 0)),
        compiler_params=pltpu.CompilerParams(
            dimension_semantics=("arbitrary",)),
    )(x_flat, adj_bd, slab)
    return out[:, :L]


# ---------------------------------------------------------------------------
# Pure-JAX reference (same math) for a correctness check.
# ---------------------------------------------------------------------------
def reference_forward(x, adj, p, gnn_iter=GNN_ITER):
    h = jax.nn.relu(x @ p["we0"] + p["be0"])
    h = jax.nn.relu(h @ p["we1"] + p["be1"])
    for _ in range(gnn_iter):
        m = adj @ h
        h = jax.nn.relu(h @ p["ws"] + m @ p["wn"] + p["bg"])
    pooled = jnp.mean(h, axis=1)            # (B, H) — AdaptiveAvgPool1d(1)
    return pooled @ p["wo"] + p["bo"][0]    # (B, L)


# ---------------------------------------------------------------------------
# Deterministic parameter init + example run.
# ---------------------------------------------------------------------------
def init_params(key):
    ks = jax.random.split(key, 6)
    s = 0.1
    return {
        "we0": s * jax.random.normal(ks[0], (INPUT_SIZE, HIDDEN_SIZE), jnp.float32),
        "be0": jnp.zeros((1, HIDDEN_SIZE), jnp.float32),
        "we1": s * jax.random.normal(ks[1], (HIDDEN_SIZE, HIDDEN_SIZE), jnp.float32),
        "be1": jnp.zeros((1, HIDDEN_SIZE), jnp.float32),
        "ws":  s * jax.random.normal(ks[2], (HIDDEN_SIZE, HIDDEN_SIZE), jnp.float32),
        "wn":  s * jax.random.normal(ks[3], (HIDDEN_SIZE, HIDDEN_SIZE), jnp.float32),
        "bg":  jnp.zeros((1, HIDDEN_SIZE), jnp.float32),
        "wo":  s * jax.random.normal(ks[4], (HIDDEN_SIZE, LATENT_SIZE), jnp.float32),
        "bo":  0.01 * jax.random.normal(ks[5], (1, LATENT_SIZE), jnp.float32),
    }


if __name__ == "__main__":
    root = jax.random.PRNGKey(0)
    k_x, k_a, k_p = jax.random.split(root, 3)

    x = jax.random.normal(k_x, (BATCH, NUM_NODES, INPUT_SIZE), jnp.float32)
    # symmetric, row-normalized adjacency with self-loops
    a = jax.random.uniform(k_a, (BATCH, NUM_NODES, NUM_NODES), jnp.float32)
    a = (a + jnp.swapaxes(a, 1, 2)) * 0.5 + jnp.eye(NUM_NODES)[None]
    adj = a / jnp.sum(a, axis=-1, keepdims=True)

    params = init_params(k_p)

    latent = pooling_graph_encoder(x, adj, params)
    latent = jax.block_until_ready(latent)

    ref = reference_forward(x, adj, params)
    assert latent.shape == (BATCH, LATENT_SIZE)
    assert jnp.allclose(latent, ref, atol=1e-4, rtol=1e-4), "mismatch vs reference"

    print("KERNEL_OK")
</pallas_src>

<mosaic_0001>
module attributes {stable_mosaic.version = 11 : i64} {
  func.func @_encoder_kernel(%arg0: i32, %arg1: memref<16x8xf32, #tpu.memory_space<vmem>>, %arg2: memref<16x16xf32, #tpu.memory_space<vmem>>, %arg3: memref<168x32xf32, #tpu.memory_space<vmem>>, %arg4: memref<2x32xf32, #tpu.memory_space<vmem>>) attributes {dimension_semantics = [#tpu.dimension_semantics<arbitrary>], iteration_bounds = array<i64: 1>, scalar_prefetch = 0 : i64, scratch_operands = 0 : i64, tpu.core_type = #tpu.core_type<tc>, window_params = [{pipeline_mode = #tpu.pipeline_mode<synchronous>, transform_indices = @transform_0, window_bounds = array<i64: 16, 8>}, {pipeline_mode = #tpu.pipeline_mode<synchronous>, transform_indices = @transform_1, window_bounds = array<i64: 16, 16>}, {pipeline_mode = #tpu.pipeline_mode<synchronous>, transform_indices = @transform_2, window_bounds = array<i64: 168, 32>}, {pipeline_mode = #tpu.pipeline_mode<synchronous>, transform_indices = @transform_3, window_bounds = array<i64: 2, 32>}]} {
    %c0 = arith.constant 0 : index
    %c0_0 = arith.constant 0 : index
    %0 = vector.load %arg3[%c0, %c0_0] : memref<168x32xf32, #tpu.memory_space<vmem>>, vector<8x32xf32>
    %c8 = arith.constant 8 : index
    %c0_1 = arith.constant 0 : index
    %1 = vector.load %arg3[%c8, %c0_1] : memref<168x32xf32, #tpu.memory_space<vmem>>, vector<1x32xf32>
    %c16 = arith.constant 16 : index
    %c0_2 = arith.constant 0 : index
    %2 = vector.load %arg3[%c16, %c0_2] : memref<168x32xf32, #tpu.memory_space<vmem>>, vector<32x32xf32>
    %c48 = arith.constant 48 : index
    %c0_3 = arith.constant 0 : index
    %3 = vector.load %arg3[%c48, %c0_3] : memref<168x32xf32, #tpu.memory_space<vmem>>, vector<1x32xf32>
    %c56 = arith.constant 56 : index
    %c0_4 = arith.constant 0 : index
    %4 = vector.load %arg3[%c56, %c0_4] : memref<168x32xf32, #tpu.memory_space<vmem>>, vector<32x32xf32>
    %c88 = arith.constant 88 : index
    %c0_5 = arith.constant 0 : index
    %5 = vector.load %arg3[%c88, %c0_5] : memref<168x32xf32, #tpu.memory_space<vmem>>, vector<32x32xf32>
    %c120 = arith.constant 120 : index
    %c0_6 = arith.constant 0 : index
    %6 = vector.load %arg3[%c120, %c0_6] : memref<168x32xf32, #tpu.memory_space<vmem>>, vector<1x32xf32>
    %c128 = arith.constant 128 : index
    %c0_7 = arith.constant 0 : index
    %7 = vector.load %arg3[%c128, %c0_7] : memref<168x32xf32, #tpu.memory_space<vmem>>, vector<32x32xf32>
    %c160 = arith.constant 160 : index
    %c0_8 = arith.constant 0 : index
    %8 = vector.load %arg3[%c160, %c0_8] : memref<168x32xf32, #tpu.memory_space<vmem>>, vector<1x32xf32>
    %c0_9 = arith.constant 0 : index
    %c0_10 = arith.constant 0 : index
    %9 = vector.load %arg1[%c0_9, %c0_10] : memref<16x8xf32, #tpu.memory_space<vmem>>, vector<16x8xf32>
    %c0_11 = arith.constant 0 : index
    %c0_12 = arith.constant 0 : index
    %10 = vector.load %arg2[%c0_11, %c0_12] : memref<16x16xf32, #tpu.memory_space<vmem>>, vector<16x16xf32>
    %cst = arith.constant dense<0.000000e+00> : vector<16x32xf32>
    %11 = tpu.matmul %9, %0, %cst {dimension_numbers = #tpu.dot_dimension_numbers<[1], [0], [0], [1], [0, 0, 1, 1], [], []>} : vector<16x8xf32>, vector<8x32xf32>, vector<16x32xf32> -> vector<16x32xf32>
    %12 = vector.broadcast %1 : vector<1x32xf32> to vector<16x32xf32>
    %13 = arith.addf %11, %12 : vector<16x32xf32>
    %cst_13 = arith.constant 0.000000e+00 : f32
    %14 = vector.broadcast %cst_13 : f32 to vector<16x32xf32>
    %15 = arith.maximumf %13, %14 : vector<16x32xf32>
    %cst_14 = arith.constant dense<0.000000e+00> : vector<16x32xf32>
    %16 = tpu.matmul %15, %2, %cst_14 {dimension_numbers = #tpu.dot_dimension_numbers<[1], [0], [0], [1], [0, 0, 1, 1], [], []>} : vector<16x32xf32>, vector<32x32xf32>, vector<16x32xf32> -> vector<16x32xf32>
    %17 = vector.broadcast %3 : vector<1x32xf32> to vector<16x32xf32>
    %18 = arith.addf %16, %17 : vector<16x32xf32>
    %cst_15 = arith.constant 0.000000e+00 : f32
    %19 = vector.broadcast %cst_15 : f32 to vector<16x32xf32>
    %20 = arith.maximumf %18, %19 : vector<16x32xf32>
    %21 = vector.shape_cast %6 : vector<1x32xf32> to vector<1x32xf32>
    %22 = vector.broadcast %21 : vector<1x32xf32> to vector<16x32xf32>
    %cst_16 = arith.constant dense<0.000000e+00> : vector<16x32xf32>
    %23 = tpu.matmul %10, %20, %cst_16 {dimension_numbers = #tpu.dot_dimension_numbers<[1], [0], [0], [1], [0, 0, 1, 1], [], []>} : vector<16x16xf32>, vector<16x32xf32>, vector<16x32xf32> -> vector<16x32xf32>
    %cst_17 = arith.constant dense<0.000000e+00> : vector<16x32xf32>
    %24 = tpu.matmul %20, %4, %cst_17 {dimension_numbers = #tpu.dot_dimension_numbers<[1], [0], [0], [1], [0, 0, 1, 1], [], []>} : vector<16x32xf32>, vector<32x32xf32>, vector<16x32xf32> -> vector<16x32xf32>
    %cst_18 = arith.constant dense<0.000000e+00> : vector<16x32xf32>
    %25 = tpu.matmul %23, %5, %cst_18 {dimension_numbers = #tpu.dot_dimension_numbers<[1], [0], [0], [1], [0, 0, 1, 1], [], []>} : vector<16x32xf32>, vector<32x32xf32>, vector<16x32xf32> -> vector<16x32xf32>
    %26 = arith.addf %24, %25 : vector<16x32xf32>
    %27 = arith.addf %26, %22 : vector<16x32xf32>
    %cst_19 = arith.constant 0.000000e+00 : f32
    %28 = vector.broadcast %cst_19 : f32 to vector<16x32xf32>
    %29 = arith.maximumf %27, %28 : vector<16x32xf32>
    %cst_20 = arith.constant dense<0.000000e+00> : vector<16x32xf32>
    %30 = tpu.matmul %10, %29, %cst_20 {dimension_numbers = #tpu.dot_dimension_numbers<[1], [0], [0], [1], [0, 0, 1, 1], [], []>} : vector<16x16xf32>, vector<16x32xf32>, vector<16x32xf32> -> vector<16x32xf32>
    %cst_21 = arith.constant dense<0.000000e+00> : vector<16x32xf32>
    %31 = tpu.matmul %29, %4, %cst_21 {dimension_numbers = #tpu.dot_dimension_numbers<[1], [0], [0], [1], [0, 0, 1, 1], [], []>} : vector<16x32xf32>, vector<32x32xf32>, vector<16x32xf32> -> vector<16x32xf32>
    %cst_22 = arith.constant dense<0.000000e+00> : vector<16x32xf32>
    %32 = tpu.matmul %30, %5, %cst_22 {dimension_numbers = #tpu.dot_dimension_numbers<[1], [0], [0], [1], [0, 0, 1, 1], [], []>} : vector<16x32xf32>, vector<32x32xf32>, vector<16x32xf32> -> vector<16x32xf32>
    %33 = arith.addf %31, %32 : vector<16x32xf32>
    %34 = arith.addf %33, %22 : vector<16x32xf32>
    %cst_23 = arith.constant 0.000000e+00 : f32
    %35 = vector.broadcast %cst_23 : f32 to vector<16x32xf32>
    %36 = arith.maximumf %34, %35 : vector<16x32xf32>
    %37 = tpu.iota {dimensions = array<i32: 0>} : vector<2x16xi32>
    %38 = tpu.iota {dimensions = array<i32: 1>} : vector<2x16xi32>
    %c8_i32 = arith.constant 8 : i32
    %39 = vector.broadcast %c8_i32 : i32 to vector<2x16xi32>
    %40 = arith.muli %37, %39 : vector<2x16xi32>
    %41 = arith.cmpi sge, %38, %40 : vector<2x16xi32>
    %c1_i32 = arith.constant 1 : i32
    %42 = vector.broadcast %c1_i32 : i32 to vector<2x16xi32>
    %43 = arith.addi %37, %42 : vector<2x16xi32>
    %c8_i32_24 = arith.constant 8 : i32
    %44 = vector.broadcast %c8_i32_24 : i32 to vector<2x16xi32>
    %45 = arith.muli %43, %44 : vector<2x16xi32>
    %46 = arith.cmpi slt, %38, %45 : vector<2x16xi32>
    %47 = arith.andi %41, %46 : vector<2x16xi1>
    %cst_25 = arith.constant 1.250000e-01 : f32
    %cst_26 = arith.constant 0.000000e+00 : f32
    %48 = vector.broadcast %cst_25 : f32 to vector<2x16xf32>
    %49 = vector.broadcast %cst_26 : f32 to vector<2x16xf32>
    %50 = arith.select %47, %48, %49 : vector<2x16xi1>, vector<2x16xf32>
    %cst_27 = arith.constant dense<0.000000e+00> : vector<2x32xf32>
    %51 = tpu.matmul %50, %36, %cst_27 {dimension_numbers = #tpu.dot_dimension_numbers<[1], [0], [0], [1], [0, 0, 1, 1], [], []>} : vector<2x16xf32>, vector<16x32xf32>, vector<2x32xf32> -> vector<2x32xf32>
    %cst_28 = arith.constant dense<0.000000e+00> : vector<2x32xf32>
    %52 = tpu.matmul %51, %7, %cst_28 {dimension_numbers = #tpu.dot_dimension_numbers<[1], [0], [0], [1], [0, 0, 1, 1], [], []>} : vector<2x32xf32>, vector<32x32xf32>, vector<2x32xf32> -> vector<2x32xf32>
    %53 = vector.broadcast %8 : vector<1x32xf32> to vector<2x32xf32>
    %54 = arith.addf %52, %53 : vector<2x32xf32>
    %c0_29 = arith.constant 0 : index
    %c0_30 = arith.constant 0 : index
    %55 = vector.load %arg4[%c0_29, %c0_30] : memref<2x32xf32, #tpu.memory_space<vmem>>, vector<2x32xf32>
    tpu.vector_store %arg4[%c0_29, %c0_30], %54 {strides = array<i32>} : memref<2x32xf32, #tpu.memory_space<vmem>>, vector<2x32xf32>,
    return
  }
  func.func @transform_0(%arg0: i32) -> (i32, i32) {
    %c0_i32 = arith.constant 0 : i32
    %c0_i32_0 = arith.constant 0 : i32
    %c0_i32_1 = arith.constant 0 : i32
    return %c0_i32, %c0_i32_0 : i32, i32
  }
  func.func @transform_1(%arg0: i32) -> (i32, i32) {
    %c0_i32 = arith.constant 0 : i32
    %c0_i32_0 = arith.constant 0 : i32
    %c0_i32_1 = arith.constant 0 : i32
    return %c0_i32, %c0_i32_0 : i32, i32
  }
  func.func @transform_2(%arg0: i32) -> (i32, i32) {
    %c0_i32 = arith.constant 0 : i32
    %c0_i32_0 = arith.constant 0 : i32
    %c0_i32_1 = arith.constant 0 : i32
    return %c0_i32, %c0_i32_0 : i32, i32
  }
  func.func @transform_3(%arg0: i32) -> (i32, i32) {
    %c0_i32 = arith.constant 0 : i32
    %c0_i32_0 = arith.constant 0 : i32
    %c0_i32_1 = arith.constant 0 : i32
    return %c0_i32, %c0_i32_0 : i32, i32
  }
}

</mosaic_0001>

<llo_original>
// kernel: tpu_custom_call.1
$region0: #{tpu_custom_call.1}
  #allocation0 [shape = 'u32[]', space=smem, size = 0x4, offset = 0x4, fixed_abs, tag = 'smem constant byte address 0x4 - core index']
  #allocation1 [shape = 'u32[72,128]{1,0:T(1,128)}', space=vmem, size = 0x9000, scoped, tag = 'internal scratch']
  %s0 = inlined_call_operand.vmem [shape: f32[16,8], index: 0, kind: input, shape index: {}]
  %s1 = inlined_call_operand.vmem [shape: f32[16,16], index: 1, kind: input, shape index: {}]
  %s2 = inlined_call_operand.vmem [shape: f32[168,32], index: 2, kind: input, shape index: {}]
  %s3 = inlined_call_operand.hbm [shape: f32[2,32], index: 3, kind: output, shape index: {}]
  %s4 = sld [smem:[#allocation0]]
  $region22: #{tpu_custom_call.1} parent=0
    _
  %s6 = ssub.s32 1, %s4
  %s7 = scalar_select 0, %s6, %s4
  $region1: #{tpu_custom_call.1} parent=0
    #allocation2 [shape = 'u8[1024]{0}', space=vmem, size = 0x400, scoped, tag = 'output window, operand 0, single buffered']
    #allocation3 [shape = 's32[1]{0}', space=sflag, size = 0x4, scoped, tag = 'scoped memory for tpu_custom_call.1']
    %8 = vsyncpa [#allocation3], 0
    // Predicated region
    $region2: #{tpu_custom_call.1} parent=1 // pred_check
      _
    $region3: #{tpu_custom_call.1} parent=1 // pred_check_branch
      %10 = sbr.rel (0) target = $region5
    $region4: #{tpu_custom_call.1} parent=1 // pred_region
      _
    $region5: #{tpu_custom_call.1} parent=1 // pred_fallthru
      _
    // Predicated region
    $region6: #{tpu_custom_call.1} parent=1 // pred_check
      _
    $region7: #{tpu_custom_call.1} parent=1 // pred_check_branch
      %12 = sbr.rel (0) target = $region9
    $region8: #{tpu_custom_call.1} parent=1 // pred_region
      _
    $region9: #{tpu_custom_call.1} parent=1 // pred_fallthru
      _
    // Predicated region
    $region10: #{tpu_custom_call.1} parent=1 // pred_check
      _
    $region11: #{tpu_custom_call.1} parent=1 // pred_check_branch
      %14 = sbr.rel (0) target = $region13
    $region12: #{tpu_custom_call.1} parent=1 // pred_region
      _
    $region13: #{tpu_custom_call.1} parent=1 // pred_fallthru
      _
    %v15 = vld [vmem:[%s2] sm:$0xff]
    %v16 = vld [vmem:[%s2 + $0x8] sm:$0x1]
    %v17 = vld [vmem:[%s2 + $0x10] sm:$0xff]
    %v18 = vld [vmem:[%s2 + $0x18] sm:$0xff]
    %v19 = vld [vmem:[%s2 + $0x20] sm:$0xff]
    %v20 = vld [vmem:[%s2 + $0x28] sm:$0xff]
    %v21 = vld [vmem:[%s2 + $0x30] sm:$0x1]
    %v22 = vld [vmem:[%s2 + $0x38] sm:$0xff]
    %v23 = vld [vmem:[%s2 + $0x40] sm:$0xff]
    %v24 = vld [vmem:[%s2 + $0x48] sm:$0xff]
    %v25 = vld [vmem:[%s2 + $0x50] sm:$0xff]
    %v26 = vld [vmem:[%s2 + $0x58] sm:$0xff]
    %v27 = vld [vmem:[%s2 + $0x60] sm:$0xff]
    %v28 = vld [vmem:[%s2 + $0x68] sm:$0xff]
    %v29 = vld [vmem:[%s2 + $0x70] sm:$0xff]
    %v30 = vld [vmem:[%s2 + $0x78] sm:$0x1]
    %v31 = vld [vmem:[%s2 + $0x80] sm:$0xff]
    %v32 = vld [vmem:[%s2 + $0x88] sm:$0xff]
    %v33 = vld [vmem:[%s2 + $0x90] sm:$0xff]
    %v34 = vld [vmem:[%s2 + $0x98] sm:$0xff]
    %v35 = vld [vmem:[%s2 + $0xa0] sm:$0x1]
    %v36 = vld [vmem:[%s0] sm:$0xff]
    %v37 = vld [vmem:[%s0 + $0x8] sm:$0xff]
    %v38 = vld [vmem:[%s1] sm:$0xff]
    %v39 = vld [vmem:[%s1 + $0x8] sm:$0xff]
    %v40 = vperm.slane %v16, 0
    %vm41 = vcmask 64512
    %v43 = vsel %vm41, %v36, 0
    %v46 = vsel %vm41, %v37, 0
    %48 = vmatpush.msra.mxu0 0.0
    %49 = vmatpush.msra.mxu0 0.0
    %50 = vmatpush.msra.mxu0 0.0
    %51 = vmatpush.msra.mxu0 0.0
    %52 = vmatpush.msra.mxu0 0.0
    %53 = vmatpush.msra.mxu0 0.0
    %54 = vmatpush.msra.mxu0 0.0
    %55 = vmatpush.msra.mxu0 0.0
    %56 = vmatpush.msra.mxu0 0.0
    %57 = vmatpush.msra.mxu0 0.0
    %58 = vmatpush.msra.mxu0 0.0
    %59 = vmatpush.msra.mxu0 0.0
    %60 = vmatpush.msra.mxu0 0.0
    %61 = vmatpush.msra.mxu0 0.0
    %62 = vmatpush.msra.mxu0 0.0
    %63 = vmatpush.msra.mxu0 %v15
    %64 = vmatmul.f32.gmra.mxu0 %v43
    %v65 = vpop.f32.mrf.mxu0
    %v66 = vadd.f32 %v40, %v65
    %67 = vmatmul.f32.gmra.mxu0 %v46
    %v68 = vpop.f32.mrf.mxu0
    %v69 = vadd.f32 %v40, %v68
    %70 = vdwg.mxu0
    %v71 = vmax.f32 %v66, 0.0
    %v72 = vmax.f32 %v69, 0.0
    %v73 = vperm.slane %v21, 0
    %vm74 = vcmask 261120
    %v76 = vsel %vm74, %v71, 0
    %v79 = vsel %vm74, %v72, 0
    %81 = vmatpush.msra.mxu0 0.0
    %82 = vmatpush.msra.mxu0 0.0
    %83 = vmatpush.msra.mxu0 0.0
    %84 = vmatpush.msra.mxu0 0.0
    %85 = vmatpush.msra.mxu0 0.0
    %86 = vmatpush.msra.mxu0 0.0
    %87 = vmatpush.msra.mxu0 0.0
    %88 = vmatpush.msra.mxu0 0.0
    %89 = vmatpush.msra.mxu0 0.0
    %90 = vmatpush.msra.mxu0 0.0
    %91 = vmatpush.msra.mxu0 0.0
    %92 = vmatpush.msra.mxu0 0.0
    %93 = vmatpush.msra.mxu0 %v20
    %94 = vmatpush.msra.mxu0 %v19
    %95 = vmatpush.msra.mxu0 %v18
    %96 = vmatpush.msra.mxu0 %v17
    %97 = vmatmul.f32.gmra.mxu0 %v76
    %v98 = vpop.f32.mrf.mxu0
    %v99 = vadd.f32 %v73, %v98
    %100 = vmatmul.f32.gmra.mxu0 %v79
    %v101 = vpop.f32.mrf.mxu0
    %v102 = vadd.f32 %v73, %v101
    %103 = vdwg.mxu0
    %v104 = vmax.f32 %v99, 0.0
    %v105 = vmax.f32 %v102, 0.0
    %v106 = vperm.slane %v30, 0
    %vm107 = vcmask 130048
    %v109 = vsel %vm107, %v38, 0
    %v112 = vsel %vm107, %v39, 0
    %114 = vmatpush.msra.mxu0 0.0
    %115 = vmatpush.msra.mxu0 0.0
    %116 = vmatpush.msra.mxu0 0.0
    %117 = vmatpush.msra.mxu0 0.0
    %118 = vmatpush.msra.mxu0 0.0
    %119 = vmatpush.msra.mxu0 0.0
    %120 = vmatpush.msra.mxu0 0.0
    %121 = vmatpush.msra.mxu0 0.0
    %122 = vmatpush.msra.mxu0 0.0
    %123 = vmatpush.msra.mxu0 0.0
    %124 = vmatpush.msra.mxu0 0.0
    %125 = vmatpush.msra.mxu0 0.0
    %126 = vmatpush.msra.mxu0 0.0
    %127 = vmatpush.msra.mxu0 0.0
    %128 = vmatpush.msra.mxu0 %v105
    %129 = vmatpush.msra.mxu0 %v104
    %130 = vmatmul.f32.gmra.mxu0 %v109
    %v131 = vpop.f32.mrf.mxu0
    %v132 = vadd.f32 0.0, %v131
    %133 = vmatmul.f32.gmra.mxu0 %v112
    %v134 = vpop.f32.mrf.mxu0
    %v135 = vadd.f32 0.0, %v134
    %136 = vdwg.mxu0
    %v138 = vsel %vm74, %v132, 0
    %v141 = vsel %vm74, %v135, 0
    %143 = vmatpush.msra.mxu0 0.0
    %144 = vmatpush.msra.mxu0 0.0
    %145 = vmatpush.msra.mxu0 0.0
    %146 = vmatpush.msra.mxu0 0.0
    %147 = vmatpush.msra.mxu0 0.0
    %148 = vmatpush.msra.mxu0 0.0
    %149 = vmatpush.msra.mxu0 0.0
    %150 = vmatpush.msra.mxu0 0.0
    %151 = vmatpush.msra.mxu0 0.0
    %152 = vmatpush.msra.mxu0 0.0
    %153 = vmatpush.msra.mxu0 0.0
    %154 = vmatpush.msra.mxu0 0.0
    %155 = vmatpush.msra.mxu0 %v29
    %156 = vmatpush.msra.mxu0 %v28
    %157 = vmatpush.msra.mxu0 %v27
    %158 = vmatpush.msra.mxu0 %v26
    %159 = vmatmul.f32.gmra.mxu0 %v138
    %v160 = vpop.f32.mrf.mxu0
    %v161 = vadd.f32 0.0, %v160
    %162 = vmatmul.f32.gmra.mxu0 %v141
    %v163 = vpop.f32.mrf.mxu0
    %v164 = vadd.f32 0.0, %v163
    %165 = vdwg.mxu0
    %v167 = vsel %vm74, %v104, 0
    %v170 = vsel %vm74, %v105, 0
    %172 = vmatpush.msra.mxu0 0.0
    %173 = vmatpush.msra.mxu0 0.0
    %174 = vmatpush.msra.mxu0 0.0
    %175 = vmatpush.msra.mxu0 0.0
    %176 = vmatpush.msra.mxu0 0.0
    %177 = vmatpush.msra.mxu0 0.0
    %178 = vmatpush.msra.mxu0 0.0
    %179 = vmatpush.msra.mxu0 0.0
    %180 = vmatpush.msra.mxu0 0.0
    %181 = vmatpush.msra.mxu0 0.0
    %182 = vmatpush.msra.mxu0 0.0
    %183 = vmatpush.msra.mxu0 0.0
    %184 = vmatpush.msra.mxu0 %v25
    %185 = vmatpush.msra.mxu0 %v24
    %186 = vmatpush.msra.mxu0 %v23
    %187 = vmatpush.msra.mxu0 %v22
    %188 = vmatmul.f32.gmra.mxu0 %v167
    %v189 = vpop.f32.mrf.mxu0
    %v190 = vadd.f32 %v161, %v189
    %191 = vmatmul.f32.gmra.mxu0 %v170
    %v192 = vpop.f32.mrf.mxu0
    %v193 = vadd.f32 %v164, %v192
    %194 = vdwg.mxu0
    %v195 = vadd.f32 %v190, %v106
    %v196 = vadd.f32 %v193, %v106
    %v197 = vmax.f32 %v195, 0.0
    %v198 = vmax.f32 %v196, 0.0
    %199 = vmatpush.msra.mxu0 0.0
    %200 = vmatpush.msra.mxu0 0.0
    %201 = vmatpush.msra.mxu0 0.0
    %202 = vmatpush.msra.mxu0 0.0
    %203 = vmatpush.msra.mxu0 0.0
    %204 = vmatpush.msra.mxu0 0.0
    %205 = vmatpush.msra.mxu0 0.0
    %206 = vmatpush.msra.mxu0 0.0
    %207 = vmatpush.msra.mxu0 0.0
    %208 = vmatpush.msra.mxu0 0.0
    %209 = vmatpush.msra.mxu0 0.0
    %210 = vmatpush.msra.mxu0 0.0
    %211 = vmatpush.msra.mxu0 0.0
    %212 = vmatpush.msra.mxu0 0.0
    %213 = vmatpush.msra.mxu0 %v198
    %214 = vmatpush.msra.mxu0 %v197
    %215 = vmatmul.f32.gmra.mxu0 %v109
    %v216 = vpop.f32.mrf.mxu0
    %v217 = vadd.f32 0.0, %v216
    %218 = vmatmul.f32.gmra.mxu0 %v112
    %v219 = vpop.f32.mrf.mxu0
    %v220 = vadd.f32 0.0, %v219
    %221 = vdwg.mxu0
    %v223 = vsel %vm74, %v217, 0
    %v226 = vsel %vm74, %v220, 0
    %228 = vmatpush.msra.mxu0 0.0
    %229 = vmatpush.msra.mxu0 0.0
    %230 = vmatpush.msra.mxu0 0.0
    %231 = vmatpush.msra.mxu0 0.0
    %232 = vmatpush.msra.mxu0 0.0
    %233 = vmatpush.msra.mxu0 0.0
    %234 = vmatpush.msra.mxu0 0.0
    %235 = vmatpush.msra.mxu0 0.0
    %236 = vmatpush.msra.mxu0 0.0
    %237 = vmatpush.msra.mxu0 0.0
    %238 = vmatpush.msra.mxu0 0.0
    %239 = vmatpush.msra.mxu0 0.0
    %240 = vmatpush.msra.mxu0 %v29
    %241 = vmatpush.msra.mxu0 %v28
    %242 = vmatpush.msra.mxu0 %v27
    %243 = vmatpush.msra.mxu0 %v26
    %244 = vmatmul.f32.gmra.mxu0 %v223
    %v245 = vpop.f32.mrf.mxu0
    %v246 = vadd.f32 0.0, %v245
    %247 = vmatmul.f32.gmra.mxu0 %v226
    %v248 = vpop.f32.mrf.mxu0
    %v249 = vadd.f32 0.0, %v248
    %250 = vdwg.mxu0
    %v252 = vsel %vm74, %v197, 0
    %v255 = vsel %vm74, %v198, 0
    %257 = vmatpush.msra.mxu0 0.0
    %258 = vmatpush.msra.mxu0 0.0
    %259 = vmatpush.msra.mxu0 0.0
    %260 = vmatpush.msra.mxu0 0.0
    %261 = vmatpush.msra.mxu0 0.0
    %262 = vmatpush.msra.mxu0 0.0
    %263 = vmatpush.msra.mxu0 0.0
    %264 = vmatpush.msra.mxu0 0.0
    %265 = vmatpush.msra.mxu0 0.0
    %266 = vmatpush.msra.mxu0 0.0
    %267 = vmatpush.msra.mxu0 0.0
    %268 = vmatpush.msra.mxu0 0.0
    %269 = vmatpush.msra.mxu0 %v25
    %270 = vmatpush.msra.mxu0 %v24
    %271 = vmatpush.msra.mxu0 %v23
    %272 = vmatpush.msra.mxu0 %v22
    %273 = vmatmul.f32.gmra.mxu0 %v252
    %v274 = vpop.f32.mrf.mxu0
    %v275 = vadd.f32 %v246, %v274
    %276 = vmatmul.f32.gmra.mxu0 %v255
    %v277 = vpop.f32.mrf.mxu0
    %v278 = vadd.f32 %v249, %v277
    %279 = vdwg.mxu0
    %v280 = vadd.f32 %v275, %v106
    %v281 = vadd.f32 %v278, %v106
    %v282 = vmax.f32 %v280, 0.0
    %v283 = vmax.f32 %v281, 0.0
    %v284 = vlaneseq
    %v285 = vshrl.u32 %v284, 7
    %v286 = vlaneseq
    %v287 = vand.u32 %v286, 127
    %v288 = vmul.u32 %v285, 8
    %vm289 = vcmp.ge.s32.totalorder %v287, %v288
    %v290 = vadd.s32 %v285, 1
    %v291 = vmul.u32 %v290, 8
    %vm292 = vcmp.lt.s32.totalorder %v287, %v291
    %vm293 = vmand %vm289, %vm292
    %v294 = vsel %vm293, 0.125, 0.0
    %v296 = vsel %vm107, %v294, 0
    %298 = vmatpush.msra.mxu0 0.0
    %299 = vmatpush.msra.mxu0 0.0
    %300 = vmatpush.msra.mxu0 0.0
    %301 = vmatpush.msra.mxu0 0.0
    %302 = vmatpush.msra.mxu0 0.0
    %303 = vmatpush.msra.mxu0 0.0
    %304 = vmatpush.msra.mxu0 0.0
    %305 = vmatpush.msra.mxu0 0.0
    %306 = vmatpush.msra.mxu0 0.0
    %307 = vmatpush.msra.mxu0 0.0
    %308 = vmatpush.msra.mxu0 0.0
    %309 = vmatpush.msra.mxu0 0.0
    %310 = vmatpush.msra.mxu0 0.0
    %311 = vmatpush.msra.mxu0 0.0
    %312 = vmatpush.msra.mxu0 %v283
    %313 = vmatpush.msra.mxu0 %v282
    %314 = vmatmul.f32.gmra.mxu0 %v296
    %v315 = vpop.f32.mrf.mxu0
    %v316 = vadd.f32 0.0, %v315
    %317 = vdwg.mxu0
    %v318 = vperm.slane %v35, 0
    %v320 = vsel %vm74, %v316, 0
    %322 = vmatpush.msra.mxu0 0.0
    %323 = vmatpush.msra.mxu0 0.0
    %324 = vmatpush.msra.mxu0 0.0
    %325 = vmatpush.msra.mxu0 0.0
    %326 = vmatpush.msra.mxu0 0.0
    %327 = vmatpush.msra.mxu0 0.0
    %328 = vmatpush.msra.mxu0 0.0
    %329 = vmatpush.msra.mxu0 0.0
    %330 = vmatpush.msra.mxu0 0.0
    %331 = vmatpush.msra.mxu0 0.0
    %332 = vmatpush.msra.mxu0 0.0
    %333 = vmatpush.msra.mxu0 0.0
    %334 = vmatpush.msra.mxu0 %v34
    %335 = vmatpush.msra.mxu0 %v33
    %336 = vmatpush.msra.mxu0 %v32
    %337 = vmatpush.msra.mxu0 %v31
    %338 = vmatmul.f32.gmra.mxu0 %v320
    %v339 = vpop.f32.mrf.mxu0
    %v340 = vadd.f32 %v318, %v339
    %341 = vdwg.mxu0
    %vm342 = vcmask 254976
    %343 = vst.msk [vmem:[#allocation2] sm:$0x3] %vm342, %v340
    // Predicated region
    $region14: #{tpu_custom_call.1} parent=1 // pred_check
      _
    $region15: #{tpu_custom_call.1} parent=1 // pred_check_branch
      %345 = sbr.rel (0) target = $region17
    $region16: #{tpu_custom_call.1} parent=1 // pred_region
      %347 = vsyncadd [#allocation3], 0
      %s349 = sshll.u32 [#allocation2], 4
      %s350 = int_to_ptr.vmem [resolvable:$true] %s349
      %s351 = sshll.u32 %s3, 4
      %s352 = int_to_ptr.hbm [resolvable:$true] %s351
      %354 = dma.vmem_to_hbm [thread:$0]  %s350, 32, %s352, [#allocation3]
    $region17: #{tpu_custom_call.1} parent=1 // pred_fallthru
      _
    // Predicated region
    $region18: #{tpu_custom_call.1} parent=1 // pred_check
      _
    $region19: #{tpu_custom_call.1} parent=1 // pred_check_branch
      %356 = sbr.rel (0) target = $region21
    $region20: #{tpu_custom_call.1} parent=1 // pred_region
      %358 = dma.done [#allocation3], 32
    $region21: #{tpu_custom_call.1} parent=1 // pred_fallthru
      _
    %359 = vsyncpa [#allocation3], 1

</llo_original>
